<compile_context>
chip_gen: v5e
topology: v5e:2x2
jax: 0.10.0
libtpu: 0.0.40
codegen_flags: <defaults>
</compile_context>

<pallas_src>
import jax
import jax.numpy as jnp
from jax.experimental import pallas as pl
from jax.experimental.pallas import tpu as pltpu

LANE = 128
NEG_BIG = -1e30   # padding bias for unused tag lanes (exact for log_softmax)


# --------------------------------------------------------------------------
# Fused Pallas kernel: blueprint walk + tag head + log_softmax
# --------------------------------------------------------------------------
def _make_fused_kernel(blueprint, E):
    def kernel(emb_ref, attn_w_ref, attn_b_ref, out_w_ref, out_b_ref,
               tag_w_ref, tag_b_ref, o_ref):
        attn_w = attn_w_ref[...]          # (E, E)
        attn_b = attn_b_ref[...]          # (1, E)
        out_w = out_w_ref[...]            # (3E, E)  -> single K=3E dot per cell
        out_b = out_b_ref[...]            # (1, E)

        relu_inputs = {}                  # memoized relu'd embedding columns
        hidden = []                       # cell outputs stay resident in VMEM

        def fetch(src):
            kind, idx = src
            if kind == 'input':
                if idx not in relu_inputs:
                    relu_inputs[idx] = jnp.maximum(emb_ref[idx], 0.0)
                return relu_inputs[idx]
            # cell outputs are already >= 0 (final relu) -> skip redundant relu
            return hidden[idx]

        for inst in blueprint:            # static unroll over the blueprint
            r = fetch(inst.r_src)
            c0 = fetch(inst.c_srcs[0])
            c1 = fetch(inst.c_srcs[1])
            attn = jnp.dot(r, attn_w, preferred_element_type=jnp.float32) + attn_b
            a0 = jnp.maximum(attn * c0, 0.0)          # relu(attn[:,None,:]*cs)[:,0]
            a1 = jnp.maximum(attn * c1, 0.0)          # relu(attn[:,None,:]*cs)[:,1]
            cat = jnp.concatenate([r, a0, a1], axis=1)          # (TB, 3E)
            h = jnp.dot(cat, out_w, preferred_element_type=jnp.float32) + out_b
            hidden.append(jnp.maximum(h, 0.0))

        # hidden_to_tag (lane-padded to 128) + numerically stable log_softmax.
        logits = (jnp.dot(hidden[-1], tag_w_ref[...],
                          preferred_element_type=jnp.float32) + tag_b_ref[...])
        m = jnp.max(logits, axis=1, keepdims=True)
        shifted = logits - m
        lse = jnp.log(jnp.sum(jnp.exp(shifted), axis=1, keepdims=True))
        o_ref[...] = shifted - lse
    return kernel


def fused_forward_pallas(emb, attn_w, attn_b2, out_w, out_b2,
                         tag_w_pad, tag_b_pad, blueprint, tagset_size,
                         batch_tile=512):
    """emb: (C, B, E) embedded token columns."""
    C, B, E = emb.shape
    TPAD = tag_w_pad.shape[1]

    # Batch tile: multiple of 8 (sublane), capped at 512 rows so the
    # double-buffered input/output tiles stay well inside v7x's 64 MiB VMEM
    # (and trivially inside v5e/v6e's 128 MiB).
    TB = min(batch_tile, max(8, ((B + 7) // 8) * 8))
    B_pad = pl.cdiv(B, TB) * TB
    if B_pad != B:
        emb = jnp.pad(emb, ((0, 0), (0, B_pad - B), (0, 0)))

    kernel = _make_fused_kernel(blueprint, E)

    out = pl.pallas_call(
        kernel,
        out_shape=jax.ShapeDtypeStruct((B_pad, TPAD), jnp.float32),
        grid=(B_pad // TB,),
        in_specs=[
            pl.BlockSpec((C, TB, E), lambda i: (0, i, 0)),        # embedded tokens
            pl.BlockSpec((E, E), lambda i: (0, 0)),               # attn W
            pl.BlockSpec((1, E), lambda i: (0, 0)),               # attn b
            pl.BlockSpec((out_w.shape[0], E), lambda i: (0, 0)),  # out W (3E, E)
            pl.BlockSpec((1, E), lambda i: (0, 0)),               # out b
            pl.BlockSpec((E, TPAD), lambda i: (0, 0)),            # tag W (padded)
            pl.BlockSpec((1, TPAD), lambda i: (0, 0)),            # tag b (padded)
        ],
        out_specs=pl.BlockSpec((TB, TPAD), lambda i: (i, 0)),
        compiler_params=pltpu.CompilerParams(
            dimension_semantics=("parallel",),        # batch tiles independent
            vmem_limit_bytes=32 * 1024 * 1024),
    )(emb, attn_w, attn_b2, out_w, out_b2, tag_w_pad, tag_b_pad)

    return out[:B, :tagset_size]


# --------------------------------------------------------------------------
# Blueprint (external structure in the original code) — minimal synthetic one
# --------------------------------------------------------------------------
class Inst:
    """Instruction: where the cell's root r and its `spread` children come from."""

    def __init__(self, r_src, c_srcs):
        self.r_src = r_src      # ('input', i) or ('hidden', j)
        self.c_srcs = c_srcs    # list of the same

    def get(self, inputs, hidden):
        def pick(src):
            kind, idx = src
            return inputs[idx] if kind == 'input' else hidden[idx]
        return pick(self.r_src), [pick(s) for s in self.c_srcs]


# --------------------------------------------------------------------------
# Model (deterministic synthetic parameters, all padding/reshaping hoisted)
# --------------------------------------------------------------------------
class FullyConnectedTaggerPallas:
    def __init__(self, vocab_size, tagset_size, pad_token, blueprint,
                 hyper_parameter, key):
        self.config = {'max_spread': 2, 'embedding_size': 16, 'spread': 2}
        self.config.update(hyper_parameter)
        E = self.config['embedding_size']
        S = self.config['spread']
        self.blueprint = blueprint
        self.tagset_size = tagset_size

        ks = jax.random.split(key, 7)
        emb = 0.1 * jax.random.normal(ks[0], (vocab_size + 1, E), jnp.float32)
        self.embedding = emb.at[pad_token].set(0.0)        # padding_idx row = 0
        self.attn_w = 0.1 * jax.random.normal(ks[1], (E, E), jnp.float32)
        self.attn_b = 0.1 * jax.random.normal(ks[2], (E,), jnp.float32)
        self.out_w = 0.1 * jax.random.normal(ks[3], ((1 + S) * E, E), jnp.float32)
        self.out_b = 0.1 * jax.random.normal(ks[4], (E,), jnp.float32)
        self.tag_w = 0.1 * jax.random.normal(ks[5], (E, tagset_size), jnp.float32)
        self.tag_b = 0.1 * jax.random.normal(ks[6], (tagset_size,), jnp.float32)

        # --- hoisted, precomputed kernel operands (done once, not per call) ---
        self.attn_b2 = self.attn_b.reshape(1, E)
        self.out_b2 = self.out_b.reshape(1, E)
        TPAD = max(LANE, pl.cdiv(tagset_size, LANE) * LANE)   # lane-dense tag head
        self.tag_w_pad = jnp.zeros((E, TPAD), jnp.float32).at[:, :tagset_size].set(self.tag_w)
        self.tag_b_pad = jnp.full((1, TPAD), NEG_BIG, jnp.float32).at[0, :tagset_size].set(self.tag_b)

    def forward(self, x, s=None):
        # x: (B, C) int32 token ids.  Embedding gather is glue in plain JAX;
        # everything downstream runs in the single fused Pallas kernel.
        emb = self.embedding[x.T]                      # (C, B, E)
        return fused_forward_pallas(emb, self.attn_w, self.attn_b2,
                                    self.out_w, self.out_b2,
                                    self.tag_w_pad, self.tag_b_pad,
                                    self.blueprint, self.tagset_size)


# --------------------------------------------------------------------------
# Pure-JAX reference (mirrors the PyTorch forward) for a correctness check
# --------------------------------------------------------------------------
def ref_forward(model, x):
    E = model.config['embedding_size']

    def cell_ref(r, c0, c1):
        cs = jnp.maximum(jnp.stack([c0, c1], axis=1), 0.0)
        r = jnp.maximum(r, 0.0)
        attn = r @ model.attn_w + model.attn_b
        applied = jnp.maximum(attn[:, None, :] * cs, 0.0).reshape(-1, E * 2)
        cat = jnp.concatenate([r, applied], axis=1)
        return jnp.maximum(cat @ model.out_w + model.out_b, 0.0)

    inputs = [model.embedding[x[:, i]] for i in range(x.shape[1])]
    hidden = []
    for inst in model.blueprint:
        r, cs = inst.get(inputs, hidden)
        hidden.append(cell_ref(r, cs[0], cs[1]))
    logits = hidden[-1] @ model.tag_w + model.tag_b
    return jax.nn.log_softmax(logits, axis=1)


# --------------------------------------------------------------------------
if __name__ == "__main__":
    key = jax.random.PRNGKey(0)
    k_param, k_data = jax.random.split(key)

    vocab_size, tagset_size, pad_token = 10, 5, 0
    B, C = 8, 4                                  # batch, number of token columns

    blueprint = [
        Inst(('input', 0), [('input', 1), ('input', 2)]),
        Inst(('input', 3), [('hidden', 0), ('input', 2)]),
        Inst(('hidden', 0), [('hidden', 1), ('input', 1)]),
    ]

    model = FullyConnectedTaggerPallas(vocab_size, tagset_size, pad_token,
                                       blueprint, hyper_parameter={}, key=k_param)

    x = jax.random.randint(k_data, (B, C), 0, vocab_size + 1, dtype=jnp.int32)

    out = model.forward(x, s=None)
    out = jax.block_until_ready(out)

    ref = ref_forward(model, x)
    assert out.shape == (B, tagset_size)
    assert jnp.allclose(out, ref, atol=1e-5, rtol=1e-5), "mismatch vs JAX reference"

    print("KERNEL_OK")
</pallas_src>

<mosaic_0001>
module attributes {stable_mosaic.version = 11 : i64} {
  func.func @kernel(%arg0: i32, %arg1: memref<4x8x16xf32, #tpu.memory_space<vmem>>, %arg2: memref<16x16xf32, #tpu.memory_space<vmem>>, %arg3: memref<1x16xf32, #tpu.memory_space<vmem>>, %arg4: memref<48x16xf32, #tpu.memory_space<vmem>>, %arg5: memref<1x16xf32, #tpu.memory_space<vmem>>, %arg6: memref<16x128xf32, #tpu.memory_space<vmem>>, %arg7: memref<1x128xf32, #tpu.memory_space<vmem>>, %arg8: memref<8x128xf32, #tpu.memory_space<vmem>>) attributes {dimension_semantics = [#tpu.dimension_semantics<parallel>], iteration_bounds = array<i64: 1>, scalar_prefetch = 0 : i64, scratch_operands = 0 : i64, tpu.core_type = #tpu.core_type<tc>, window_params = [{transform_indices = @transform_0, window_bounds = array<i64: 4, 8, 16>}, {pipeline_mode = #tpu.pipeline_mode<synchronous>, transform_indices = @transform_1, window_bounds = array<i64: 16, 16>}, {pipeline_mode = #tpu.pipeline_mode<synchronous>, transform_indices = @transform_2, window_bounds = array<i64: 1, 16>}, {pipeline_mode = #tpu.pipeline_mode<synchronous>, transform_indices = @transform_3, window_bounds = array<i64: 48, 16>}, {pipeline_mode = #tpu.pipeline_mode<synchronous>, transform_indices = @transform_4, window_bounds = array<i64: 1, 16>}, {pipeline_mode = #tpu.pipeline_mode<synchronous>, transform_indices = @transform_5, window_bounds = array<i64: 16, 128>}, {pipeline_mode = #tpu.pipeline_mode<synchronous>, transform_indices = @transform_6, window_bounds = array<i64: 1, 128>}, {transform_indices = @transform_7, window_bounds = array<i64: 8, 128>}]} {
    %c0 = arith.constant 0 : index
    %c0_0 = arith.constant 0 : index
    %0 = vector.load %arg2[%c0, %c0_0] : memref<16x16xf32, #tpu.memory_space<vmem>>, vector<16x16xf32>
    %c0_1 = arith.constant 0 : index
    %c0_2 = arith.constant 0 : index
    %1 = vector.load %arg3[%c0_1, %c0_2] : memref<1x16xf32, #tpu.memory_space<vmem>>, vector<1x16xf32>
    %c0_3 = arith.constant 0 : index
    %c0_4 = arith.constant 0 : index
    %2 = vector.load %arg4[%c0_3, %c0_4] : memref<48x16xf32, #tpu.memory_space<vmem>>, vector<48x16xf32>
    %c0_5 = arith.constant 0 : index
    %c0_6 = arith.constant 0 : index
    %3 = vector.load %arg5[%c0_5, %c0_6] : memref<1x16xf32, #tpu.memory_space<vmem>>, vector<1x16xf32>
    %c0_7 = arith.constant 0 : index
    %c0_8 = arith.constant 0 : index
    %c0_9 = arith.constant 0 : index
    %4 = vector.load %arg1[%c0_7, %c0_8, %c0_9] : memref<4x8x16xf32, #tpu.memory_space<vmem>>, vector<1x8x16xf32>
    %5 = vector.shape_cast %4 : vector<1x8x16xf32> to vector<8x16xf32>
    %cst = arith.constant 0.000000e+00 : f32
    %6 = vector.broadcast %cst : f32 to vector<8x16xf32>
    %7 = arith.maximumf %5, %6 : vector<8x16xf32>
    %c1 = arith.constant 1 : index
    %c0_10 = arith.constant 0 : index
    %c0_11 = arith.constant 0 : index
    %8 = vector.load %arg1[%c1, %c0_10, %c0_11] : memref<4x8x16xf32, #tpu.memory_space<vmem>>, vector<1x8x16xf32>
    %9 = vector.shape_cast %8 : vector<1x8x16xf32> to vector<8x16xf32>
    %cst_12 = arith.constant 0.000000e+00 : f32
    %10 = vector.broadcast %cst_12 : f32 to vector<8x16xf32>
    %11 = arith.maximumf %9, %10 : vector<8x16xf32>
    %c2 = arith.constant 2 : index
    %c0_13 = arith.constant 0 : index
    %c0_14 = arith.constant 0 : index
    %12 = vector.load %arg1[%c2, %c0_13, %c0_14] : memref<4x8x16xf32, #tpu.memory_space<vmem>>, vector<1x8x16xf32>
    %13 = vector.shape_cast %12 : vector<1x8x16xf32> to vector<8x16xf32>
    %cst_15 = arith.constant 0.000000e+00 : f32
    %14 = vector.broadcast %cst_15 : f32 to vector<8x16xf32>
    %15 = arith.maximumf %13, %14 : vector<8x16xf32>
    %cst_16 = arith.constant dense<0.000000e+00> : vector<8x16xf32>
    %16 = tpu.matmul %7, %0, %cst_16 {dimension_numbers = #tpu.dot_dimension_numbers<[1], [0], [0], [1], [0, 0, 1, 1], [], []>} : vector<8x16xf32>, vector<16x16xf32>, vector<8x16xf32> -> vector<8x16xf32>
    %17 = vector.broadcast %1 : vector<1x16xf32> to vector<8x16xf32>
    %18 = arith.addf %16, %17 : vector<8x16xf32>
    %19 = arith.mulf %18, %11 : vector<8x16xf32>
    %cst_17 = arith.constant 0.000000e+00 : f32
    %20 = vector.broadcast %cst_17 : f32 to vector<8x16xf32>
    %21 = arith.maximumf %19, %20 : vector<8x16xf32>
    %22 = arith.mulf %18, %15 : vector<8x16xf32>
    %cst_18 = arith.constant 0.000000e+00 : f32
    %23 = vector.broadcast %cst_18 : f32 to vector<8x16xf32>
    %24 = arith.maximumf %22, %23 : vector<8x16xf32>
    %25 = tpu.concatenate %7, %21, %24 in 1 : vector<8x16xf32>, vector<8x16xf32>, vector<8x16xf32> -> vector<8x48xf32>
    %cst_19 = arith.constant dense<0.000000e+00> : vector<8x16xf32>
    %26 = tpu.matmul %25, %2, %cst_19 {dimension_numbers = #tpu.dot_dimension_numbers<[1], [0], [0], [1], [0, 0, 1, 1], [], []>} : vector<8x48xf32>, vector<48x16xf32>, vector<8x16xf32> -> vector<8x16xf32>
    %27 = vector.broadcast %3 : vector<1x16xf32> to vector<8x16xf32>
    %28 = arith.addf %26, %27 : vector<8x16xf32>
    %cst_20 = arith.constant 0.000000e+00 : f32
    %29 = vector.broadcast %cst_20 : f32 to vector<8x16xf32>
    %30 = arith.maximumf %28, %29 : vector<8x16xf32>
    %c3 = arith.constant 3 : index
    %c0_21 = arith.constant 0 : index
    %c0_22 = arith.constant 0 : index
    %31 = vector.load %arg1[%c3, %c0_21, %c0_22] : memref<4x8x16xf32, #tpu.memory_space<vmem>>, vector<1x8x16xf32>
    %32 = vector.shape_cast %31 : vector<1x8x16xf32> to vector<8x16xf32>
    %cst_23 = arith.constant 0.000000e+00 : f32
    %33 = vector.broadcast %cst_23 : f32 to vector<8x16xf32>
    %34 = arith.maximumf %32, %33 : vector<8x16xf32>
    %cst_24 = arith.constant dense<0.000000e+00> : vector<8x16xf32>
    %35 = tpu.matmul %34, %0, %cst_24 {dimension_numbers = #tpu.dot_dimension_numbers<[1], [0], [0], [1], [0, 0, 1, 1], [], []>} : vector<8x16xf32>, vector<16x16xf32>, vector<8x16xf32> -> vector<8x16xf32>
    %36 = vector.broadcast %1 : vector<1x16xf32> to vector<8x16xf32>
    %37 = arith.addf %35, %36 : vector<8x16xf32>
    %38 = arith.mulf %37, %30 : vector<8x16xf32>
    %cst_25 = arith.constant 0.000000e+00 : f32
    %39 = vector.broadcast %cst_25 : f32 to vector<8x16xf32>
    %40 = arith.maximumf %38, %39 : vector<8x16xf32>
    %41 = arith.mulf %37, %15 : vector<8x16xf32>
    %cst_26 = arith.constant 0.000000e+00 : f32
    %42 = vector.broadcast %cst_26 : f32 to vector<8x16xf32>
    %43 = arith.maximumf %41, %42 : vector<8x16xf32>
    %44 = tpu.concatenate %34, %40, %43 in 1 : vector<8x16xf32>, vector<8x16xf32>, vector<8x16xf32> -> vector<8x48xf32>
    %cst_27 = arith.constant dense<0.000000e+00> : vector<8x16xf32>
    %45 = tpu.matmul %44, %2, %cst_27 {dimension_numbers = #tpu.dot_dimension_numbers<[1], [0], [0], [1], [0, 0, 1, 1], [], []>} : vector<8x48xf32>, vector<48x16xf32>, vector<8x16xf32> -> vector<8x16xf32>
    %46 = vector.broadcast %3 : vector<1x16xf32> to vector<8x16xf32>
    %47 = arith.addf %45, %46 : vector<8x16xf32>
    %cst_28 = arith.constant 0.000000e+00 : f32
    %48 = vector.broadcast %cst_28 : f32 to vector<8x16xf32>
    %49 = arith.maximumf %47, %48 : vector<8x16xf32>
    %cst_29 = arith.constant dense<0.000000e+00> : vector<8x16xf32>
    %50 = tpu.matmul %30, %0, %cst_29 {dimension_numbers = #tpu.dot_dimension_numbers<[1], [0], [0], [1], [0, 0, 1, 1], [], []>} : vector<8x16xf32>, vector<16x16xf32>, vector<8x16xf32> -> vector<8x16xf32>
    %51 = vector.broadcast %1 : vector<1x16xf32> to vector<8x16xf32>
    %52 = arith.addf %50, %51 : vector<8x16xf32>
    %53 = arith.mulf %52, %49 : vector<8x16xf32>
    %cst_30 = arith.constant 0.000000e+00 : f32
    %54 = vector.broadcast %cst_30 : f32 to vector<8x16xf32>
    %55 = arith.maximumf %53, %54 : vector<8x16xf32>
    %56 = arith.mulf %52, %11 : vector<8x16xf32>
    %cst_31 = arith.constant 0.000000e+00 : f32
    %57 = vector.broadcast %cst_31 : f32 to vector<8x16xf32>
    %58 = arith.maximumf %56, %57 : vector<8x16xf32>
    %59 = tpu.concatenate %30, %55, %58 in 1 : vector<8x16xf32>, vector<8x16xf32>, vector<8x16xf32> -> vector<8x48xf32>
    %cst_32 = arith.constant dense<0.000000e+00> : vector<8x16xf32>
    %60 = tpu.matmul %59, %2, %cst_32 {dimension_numbers = #tpu.dot_dimension_numbers<[1], [0], [0], [1], [0, 0, 1, 1], [], []>} : vector<8x48xf32>, vector<48x16xf32>, vector<8x16xf32> -> vector<8x16xf32>
    %61 = vector.broadcast %3 : vector<1x16xf32> to vector<8x16xf32>
    %62 = arith.addf %60, %61 : vector<8x16xf32>
    %cst_33 = arith.constant 0.000000e+00 : f32
    %63 = vector.broadcast %cst_33 : f32 to vector<8x16xf32>
    %64 = arith.maximumf %62, %63 : vector<8x16xf32>
    %c0_34 = arith.constant 0 : index
    %c0_35 = arith.constant 0 : index
    %65 = vector.load %arg6[%c0_34, %c0_35] : memref<16x128xf32, #tpu.memory_space<vmem>>, vector<16x128xf32>
    %cst_36 = arith.constant dense<0.000000e+00> : vector<8x128xf32>
    %66 = tpu.matmul %64, %65, %cst_36 {dimension_numbers = #tpu.dot_dimension_numbers<[1], [0], [0], [1], [0, 0, 1, 1], [], []>} : vector<8x16xf32>, vector<16x128xf32>, vector<8x128xf32> -> vector<8x128xf32>
    %c0_37 = arith.constant 0 : index
    %c0_38 = arith.constant 0 : index
    %67 = vector.load %arg7[%c0_37, %c0_38] : memref<1x128xf32, #tpu.memory_space<vmem>>, vector<1x128xf32>
    %68 = vector.broadcast %67 : vector<1x128xf32> to vector<8x128xf32>
    %69 = arith.addf %66, %68 : vector<8x128xf32>
    %cst_39 = arith.constant dense<0xFF800000> : vector<8xf32>
    %70 = vector.multi_reduction <maximumf>, %69, %cst_39 [1] : vector<8x128xf32> to vector<8xf32>
    %71 = vector.shape_cast %70 : vector<8xf32> to vector<8x1xf32>
    %72 = vector.broadcast %71 : vector<8x1xf32> to vector<8x128xf32>
    %73 = arith.subf %69, %72 : vector<8x128xf32>
    %74 = math.exp %73 : vector<8x128xf32>
    %cst_40 = arith.constant dense<0.000000e+00> : vector<8xf32>
    %75 = vector.multi_reduction <add>, %74, %cst_40 [1] : vector<8x128xf32> to vector<8xf32>
    %76 = vector.shape_cast %75 : vector<8xf32> to vector<8x1xf32>
    %77 = math.log %76 : vector<8x1xf32>
    %78 = vector.broadcast %77 : vector<8x1xf32> to vector<8x128xf32>
    %79 = arith.subf %73, %78 : vector<8x128xf32>
    %c0_41 = arith.constant 0 : index
    %c0_42 = arith.constant 0 : index
    %80 = vector.load %arg8[%c0_41, %c0_42] : memref<8x128xf32, #tpu.memory_space<vmem>>, vector<8x128xf32>
    tpu.vector_store %arg8[%c0_41, %c0_42], %79 {strides = array<i32>} : memref<8x128xf32, #tpu.memory_space<vmem>>, vector<8x128xf32>,
    return
  }
  func.func @transform_0(%arg0: i32) -> (i32, i32, i32) {
    %c0_i32 = arith.constant 0 : i32
    %c0_i32_0 = arith.constant 0 : i32
    %c0_i32_1 = arith.constant 0 : i32
    return %c0_i32, %arg0, %c0_i32_0 : i32, i32, i32
  }
  func.func @transform_1(%arg0: i32) -> (i32, i32) {
    %c0_i32 = arith.constant 0 : i32
    %c0_i32_0 = arith.constant 0 : i32
    %c0_i32_1 = arith.constant 0 : i32
    return %c0_i32, %c0_i32_0 : i32, i32
  }
  func.func @transform_2(%arg0: i32) -> (i32, i32) {
    %c0_i32 = arith.constant 0 : i32
    %c0_i32_0 = arith.constant 0 : i32
    %c0_i32_1 = arith.constant 0 : i32
    return %c0_i32, %c0_i32_0 : i32, i32
  }
  func.func @transform_3(%arg0: i32) -> (i32, i32) {
    %c0_i32 = arith.constant 0 : i32
    %c0_i32_0 = arith.constant 0 : i32
    %c0_i32_1 = arith.constant 0 : i32
    return %c0_i32, %c0_i32_0 : i32, i32
  }
  func.func @transform_4(%arg0: i32) -> (i32, i32) {
    %c0_i32 = arith.constant 0 : i32
    %c0_i32_0 = arith.constant 0 : i32
    %c0_i32_1 = arith.constant 0 : i32
    return %c0_i32, %c0_i32_0 : i32, i32
  }
  func.func @transform_5(%arg0: i32) -> (i32, i32) {
    %c0_i32 = arith.constant 0 : i32
    %c0_i32_0 = arith.constant 0 : i32
    %c0_i32_1 = arith.constant 0 : i32
    return %c0_i32, %c0_i32_0 : i32, i32
  }
  func.func @transform_6(%arg0: i32) -> (i32, i32) {
    %c0_i32 = arith.constant 0 : i32
    %c0_i32_0 = arith.constant 0 : i32
    %c0_i32_1 = arith.constant 0 : i32
    return %c0_i32, %c0_i32_0 : i32, i32
  }
  func.func @transform_7(%arg0: i32) -> (i32, i32) {
    %c0_i32 = arith.constant 0 : i32
    %c0_i32_0 = arith.constant 0 : i32
    return %arg0, %c0_i32 : i32, i32
  }
}

</mosaic_0001>

<llo_original>
// kernel: tpu_custom_call.1
$region0: #{tpu_custom_call.1}
  #allocation0 [shape = 'u32[]', space=smem, size = 0x4, offset = 0x4, fixed_abs, tag = 'smem constant byte address 0x4 - core index']
  #allocation1 [shape = 'u32[72,128]{1,0:T(1,128)}', space=vmem, size = 0x9000, scoped, tag = 'internal scratch']
  %s0 = inlined_call_operand.vmem [shape: f32[4,8,16], index: 0, kind: input, shape index: {}]
  %s1 = inlined_call_operand.vmem [shape: f32[16,16], index: 1, kind: input, shape index: {}]
  %s2 = inlined_call_operand.vmem [shape: f32[1,16], index: 2, kind: input, shape index: {}]
  %s3 = inlined_call_operand.vmem [shape: f32[48,16], index: 3, kind: input, shape index: {}]
  %s4 = inlined_call_operand.vmem [shape: f32[1,16], index: 4, kind: input, shape index: {}]
  %s5 = inlined_call_operand.vmem [shape: f32[16,128], index: 5, kind: input, shape index: {}]
  %s6 = inlined_call_operand.vmem [shape: f32[1,128], index: 6, kind: input, shape index: {}]
  %s7 = inlined_call_operand.hbm [shape: f32[8,128], index: 7, kind: output, shape index: {}]
  %s8 = sld [smem:[#allocation0]]
  $region38: #{tpu_custom_call.1} parent=0
    _
  %s10 = ssub.s32 1, %s8
  %s11 = scalar_select 0, %s10, %s8
  $region1: #{tpu_custom_call.1} parent=0
    #allocation2 [shape = 'u8[4096]{0}', space=vmem, size = 0x1000, scoped, tag = 'output window, operand 0, single buffered']
    #allocation3 [shape = 's32[1]{0}', space=sflag, size = 0x4, scoped, tag = 'scoped memory for tpu_custom_call.1']
    %12 = vsyncpa [#allocation3], 0
    // Predicated region
    $region2: #{tpu_custom_call.1} parent=1 // pred_check
      _
    $region3: #{tpu_custom_call.1} parent=1 // pred_check_branch
      %14 = sbr.rel (0) target = $region5
    $region4: #{tpu_custom_call.1} parent=1 // pred_region
      _
    $region5: #{tpu_custom_call.1} parent=1 // pred_fallthru
      _
    // Predicated region
    $region6: #{tpu_custom_call.1} parent=1 // pred_check
      _
    $region7: #{tpu_custom_call.1} parent=1 // pred_check_branch
      %16 = sbr.rel (0) target = $region9
    $region8: #{tpu_custom_call.1} parent=1 // pred_region
      _
    $region9: #{tpu_custom_call.1} parent=1 // pred_fallthru
      _
    // Predicated region
    $region10: #{tpu_custom_call.1} parent=1 // pred_check
      _
    $region11: #{tpu_custom_call.1} parent=1 // pred_check_branch
      %18 = sbr.rel (0) target = $region13
    $region12: #{tpu_custom_call.1} parent=1 // pred_region
      _
    $region13: #{tpu_custom_call.1} parent=1 // pred_fallthru
      _
    // Predicated region
    $region14: #{tpu_custom_call.1} parent=1 // pred_check
      _
    $region15: #{tpu_custom_call.1} parent=1 // pred_check_branch
      %20 = sbr.rel (0) target = $region17
    $region16: #{tpu_custom_call.1} parent=1 // pred_region
      _
    $region17: #{tpu_custom_call.1} parent=1 // pred_fallthru
      _
    // Predicated region
    $region18: #{tpu_custom_call.1} parent=1 // pred_check
      _
    $region19: #{tpu_custom_call.1} parent=1 // pred_check_branch
      %22 = sbr.rel (0) target = $region21
    $region20: #{tpu_custom_call.1} parent=1 // pred_region
      _
    $region21: #{tpu_custom_call.1} parent=1 // pred_fallthru
      _
    // Predicated region
    $region22: #{tpu_custom_call.1} parent=1 // pred_check
      _
    $region23: #{tpu_custom_call.1} parent=1 // pred_check_branch
      %24 = sbr.rel (0) target = $region25
    $region24: #{tpu_custom_call.1} parent=1 // pred_region
      _
    $region25: #{tpu_custom_call.1} parent=1 // pred_fallthru
      _
    // Predicated region
    $region26: #{tpu_custom_call.1} parent=1 // pred_check
      _
    $region27: #{tpu_custom_call.1} parent=1 // pred_check_branch
      %26 = sbr.rel (0) target = $region29
    $region28: #{tpu_custom_call.1} parent=1 // pred_region
      _
    $region29: #{tpu_custom_call.1} parent=1 // pred_fallthru
      _
    %v27 = vld [vmem:[%s1] sm:$0xff]
    %v28 = vld [vmem:[%s1 + $0x8] sm:$0xff]
    %v29 = vld [vmem:[%s2] sm:$0x1]
    %v30 = vld [vmem:[%s3] sm:$0xff]
    %v31 = vld [vmem:[%s3 + $0x8] sm:$0xff]
    %v32 = vld [vmem:[%s3 + $0x10] sm:$0xff]
    %v33 = vld [vmem:[%s3 + $0x18] sm:$0xff]
    %v34 = vld [vmem:[%s3 + $0x20] sm:$0xff]
    %v35 = vld [vmem:[%s3 + $0x28] sm:$0xff]
    %v36 = vld [vmem:[%s4] sm:$0x1]
    %v37 = vld [vmem:[%s0] sm:$0xff]
    %v38 = vmax.f32 %v37, 0.0
    %s39 = scalar_lea.vmem %s0, 8
    %v40 = vld [vmem:[%s39] sm:$0xff]
    %v41 = vmax.f32 %v40, 0.0
    %s42 = scalar_lea.vmem %s0, 16
    %v43 = vld [vmem:[%s42] sm:$0xff]
    %v44 = vmax.f32 %v43, 0.0
    %v46 = vperm.slane %v29, 0
    %vm48 = vcmask 130048
    %v50 = vsel %vm48, %v38, 0
    %52 = vmatpush.msra.mxu0 0.0
    %53 = vmatpush.msra.mxu0 0.0
    %54 = vmatpush.msra.mxu0 0.0
    %55 = vmatpush.msra.mxu0 0.0
    %56 = vmatpush.msra.mxu0 0.0
    %57 = vmatpush.msra.mxu0 0.0
    %58 = vmatpush.msra.mxu0 0.0
    %59 = vmatpush.msra.mxu0 0.0
    %60 = vmatpush.msra.mxu0 0.0
    %61 = vmatpush.msra.mxu0 0.0
    %62 = vmatpush.msra.mxu0 0.0
    %63 = vmatpush.msra.mxu0 0.0
    %64 = vmatpush.msra.mxu0 0.0
    %65 = vmatpush.msra.mxu0 0.0
    %66 = vmatpush.msra.mxu0 %v28
    %67 = vmatpush.msra.mxu0 %v27
    %68 = vmatmul.f32.gmra.mxu0 %v50
    %v69 = vpop.f32.mrf.mxu0
    %v70 = vadd.f32 %v46, %v69
    %71 = vdwg.mxu0
    %v72 = vmul.f32 %v70, %v41
    %v73 = vmax.f32 %v72, 0.0
    %v74 = vmul.f32 %v70, %v44
    %v75 = vmax.f32 %v74, 0.0
    %77 = vrot.lane.b32.xlu0 %v73, 16
    %v78 = vpop.permute.xlu0 %77
    %81 = vrot.lane.b32.xlu0 %v75, 32
    %v82 = vpop.permute.xlu0 %81
    %v84 = vsel %vm48, %v38, %v78
    %vm85 = vcmask 261120
    %v86 = vsel %vm85, %v84, %v82
    %v88 = vperm.slane %v36, 0
    %vm90 = vcmask 392192
    %v92 = vsel %vm90, %v86, 0
    %94 = vmatpush.msra.mxu0 0.0
    %95 = vmatpush.msra.mxu0 0.0
    %96 = vmatpush.msra.mxu0 0.0
    %97 = vmatpush.msra.mxu0 0.0
    %98 = vmatpush.msra.mxu0 0.0
    %99 = vmatpush.msra.mxu0 0.0
    %100 = vmatpush.msra.mxu0 0.0
    %101 = vmatpush.msra.mxu0 0.0
    %102 = vmatpush.msra.mxu0 0.0
    %103 = vmatpush.msra.mxu0 0.0
    %104 = vmatpush.msra.mxu0 %v35
    %105 = vmatpush.msra.mxu0 %v34
    %106 = vmatpush.msra.mxu0 %v33
    %107 = vmatpush.msra.mxu0 %v32
    %108 = vmatpush.msra.mxu0 %v31
    %109 = vmatpush.msra.mxu0 %v30
    %110 = vmatmul.f32.gmra.mxu0 %v92
    %v111 = vpop.f32.mrf.mxu0
    %v112 = vadd.f32 %v88, %v111
    %113 = vdwg.mxu0
    %v114 = vmax.f32 %v112, 0.0
    %s115 = scalar_lea.vmem %s0, 24
    %v116 = vld [vmem:[%s115] sm:$0xff]
    %v117 = vmax.f32 %v116, 0.0
    %v119 = vsel %vm48, %v117, 0
    %121 = vmatpush.msra.mxu0 0.0
    %122 = vmatpush.msra.mxu0 0.0
    %123 = vmatpush.msra.mxu0 0.0
    %124 = vmatpush.msra.mxu0 0.0
    %125 = vmatpush.msra.mxu0 0.0
    %126 = vmatpush.msra.mxu0 0.0
    %127 = vmatpush.msra.mxu0 0.0
    %128 = vmatpush.msra.mxu0 0.0
    %129 = vmatpush.msra.mxu0 0.0
    %130 = vmatpush.msra.mxu0 0.0
    %131 = vmatpush.msra.mxu0 0.0
    %132 = vmatpush.msra.mxu0 0.0
    %133 = vmatpush.msra.mxu0 0.0
    %134 = vmatpush.msra.mxu0 0.0
    %135 = vmatpush.msra.mxu0 %v28
    %136 = vmatpush.msra.mxu0 %v27
    %137 = vmatmul.f32.gmra.mxu0 %v119
    %v138 = vpop.f32.mrf.mxu0
    %v139 = vadd.f32 %v46, %v138
    %140 = vdwg.mxu0
    %v141 = vmul.f32 %v139, %v114
    %v142 = vmax.f32 %v141, 0.0
    %v143 = vmul.f32 %v139, %v44
    %v144 = vmax.f32 %v143, 0.0
    %146 = vrot.lane.b32.xlu0 %v142, 16
    %v147 = vpop.permute.xlu0 %146
    %150 = vrot.lane.b32.xlu0 %v144, 32
    %v151 = vpop.permute.xlu0 %150
    %v153 = vsel %vm48, %v117, %v147
    %v154 = vsel %vm85, %v153, %v151
    %v156 = vsel %vm90, %v154, 0
    %158 = vmatpush.msra.mxu0 0.0
    %159 = vmatpush.msra.mxu0 0.0
    %160 = vmatpush.msra.mxu0 0.0
    %161 = vmatpush.msra.mxu0 0.0
    %162 = vmatpush.msra.mxu0 0.0
    %163 = vmatpush.msra.mxu0 0.0
    %164 = vmatpush.msra.mxu0 0.0
    %165 = vmatpush.msra.mxu0 0.0
    %166 = vmatpush.msra.mxu0 0.0
    %167 = vmatpush.msra.mxu0 0.0
    %168 = vmatpush.msra.mxu0 %v35
    %169 = vmatpush.msra.mxu0 %v34
    %170 = vmatpush.msra.mxu0 %v33
    %171 = vmatpush.msra.mxu0 %v32
    %172 = vmatpush.msra.mxu0 %v31
    %173 = vmatpush.msra.mxu0 %v30
    %174 = vmatmul.f32.gmra.mxu0 %v156
    %v175 = vpop.f32.mrf.mxu0
    %v176 = vadd.f32 %v88, %v175
    %177 = vdwg.mxu0
    %v178 = vmax.f32 %v176, 0.0
    %v180 = vsel %vm48, %v114, 0
    %182 = vmatpush.msra.mxu0 0.0
    %183 = vmatpush.msra.mxu0 0.0
    %184 = vmatpush.msra.mxu0 0.0
    %185 = vmatpush.msra.mxu0 0.0
    %186 = vmatpush.msra.mxu0 0.0
    %187 = vmatpush.msra.mxu0 0.0
    %188 = vmatpush.msra.mxu0 0.0
    %189 = vmatpush.msra.mxu0 0.0
    %190 = vmatpush.msra.mxu0 0.0
    %191 = vmatpush.msra.mxu0 0.0
    %192 = vmatpush.msra.mxu0 0.0
    %193 = vmatpush.msra.mxu0 0.0
    %194 = vmatpush.msra.mxu0 0.0
    %195 = vmatpush.msra.mxu0 0.0
    %196 = vmatpush.msra.mxu0 %v28
    %197 = vmatpush.msra.mxu0 %v27
    %198 = vmatmul.f32.gmra.mxu0 %v180
    %v199 = vpop.f32.mrf.mxu0
    %v200 = vadd.f32 %v46, %v199
    %201 = vdwg.mxu0
    %v202 = vmul.f32 %v200, %v178
    %v203 = vmax.f32 %v202, 0.0
    %v204 = vmul.f32 %v200, %v41
    %v205 = vmax.f32 %v204, 0.0
    %207 = vrot.lane.b32.xlu0 %v203, 16
    %v208 = vpop.permute.xlu0 %207
    %211 = vrot.lane.b32.xlu0 %v205, 32
    %v212 = vpop.permute.xlu0 %211
    %v214 = vsel %vm48, %v114, %v208
    %v215 = vsel %vm85, %v214, %v212
    %v217 = vsel %vm90, %v215, 0
    %219 = vmatpush.msra.mxu0 0.0
    %220 = vmatpush.msra.mxu0 0.0
    %221 = vmatpush.msra.mxu0 0.0
    %222 = vmatpush.msra.mxu0 0.0
    %223 = vmatpush.msra.mxu0 0.0
    %224 = vmatpush.msra.mxu0 0.0
    %225 = vmatpush.msra.mxu0 0.0
    %226 = vmatpush.msra.mxu0 0.0
    %227 = vmatpush.msra.mxu0 0.0
    %228 = vmatpush.msra.mxu0 0.0
    %229 = vmatpush.msra.mxu0 %v35
    %230 = vmatpush.msra.mxu0 %v34
    %231 = vmatpush.msra.mxu0 %v33
    %232 = vmatpush.msra.mxu0 %v32
    %233 = vmatpush.msra.mxu0 %v31
    %234 = vmatpush.msra.mxu0 %v30
    %235 = vmatmul.f32.gmra.mxu0 %v217
    %v236 = vpop.f32.mrf.mxu0
    %v237 = vadd.f32 %v88, %v236
    %238 = vdwg.mxu0
    %v239 = vmax.f32 %v237, 0.0
    %v240 = vld [vmem:[%s5] sm:$0xff]
    %v241 = vld [vmem:[%s5 + $0x8] sm:$0xff]
    %v242 = vld [vmem:[%s6] sm:$0x1]
    %v244 = vperm.slane %v242, 0
    %v247 = vsel %vm48, %v239, 0
    %249 = vmatpush.msra.mxu0 0.0
    %250 = vmatpush.msra.mxu0 0.0
    %251 = vmatpush.msra.mxu0 0.0
    %252 = vmatpush.msra.mxu0 0.0
    %253 = vmatpush.msra.mxu0 0.0
    %254 = vmatpush.msra.mxu0 0.0
    %255 = vmatpush.msra.mxu0 0.0
    %256 = vmatpush.msra.mxu0 0.0
    %257 = vmatpush.msra.mxu0 0.0
    %258 = vmatpush.msra.mxu0 0.0
    %259 = vmatpush.msra.mxu0 0.0
    %260 = vmatpush.msra.mxu0 0.0
    %261 = vmatpush.msra.mxu0 0.0
    %262 = vmatpush.msra.mxu0 0.0
    %263 = vmatpush.msra.mxu0 %v241
    %264 = vmatpush.msra.mxu0 %v240
    %265 = vmatmul.f32.gmra.mxu0 %v247
    %v266 = vpop.f32.mrf.mxu0
    %v267 = vadd.f32 %v244, %v266
    %268 = vdwg.mxu0
    %269 = vmax.xlane.f32.xlu0 %v267
    %v270 = vpop.xlane.xlu0 %269
    %v271 = vsub.f32 %v267, %v270
    %v272 = vmul.f32 %v271, 1.442695
    %v273 = vpow.pop %v272
    %274 = vadd.xlane.f32.xlu0 %v273
    %v275 = vpop.xlane.xlu0 %274
    %v276 = vlog2.pop %v275
    %v277 = vmul.f32 %v276, 0.6931472
    %v278 = vsub.f32 %v271, %v277
    %279 = vst [vmem:[#allocation2] sm:$0xff] %v278
    // Predicated region
    $region30: #{tpu_custom_call.1} parent=1 // pred_check
      _
    $region31: #{tpu_custom_call.1} parent=1 // pred_check_branch
      %281 = sbr.rel (0) target = $region33
    $region32: #{tpu_custom_call.1} parent=1 // pred_region
      %283 = vsyncadd [#allocation3], 0
      %s285 = sshll.u32 [#allocation2], 4
      %s286 = int_to_ptr.vmem [resolvable:$true] %s285
      %s287 = sshll.u32 %s7, 4
      %s288 = int_to_ptr.hbm [resolvable:$true] %s287
      %290 = dma.vmem_to_hbm [thread:$0]  %s286, 128, %s288, [#allocation3]
    $region33: #{tpu_custom_call.1} parent=1 // pred_fallthru
      _
    // Predicated region
    $region34: #{tpu_custom_call.1} parent=1 // pred_check
      _
    $region35: #{tpu_custom_call.1} parent=1 // pred_check_branch
      %292 = sbr.rel (0) target = $region37
    $region36: #{tpu_custom_call.1} parent=1 // pred_region
      %294 = dma.done [#allocation3], 128
    $region37: #{tpu_custom_call.1} parent=1 // pred_fallthru
      _
    %295 = vsyncpa [#allocation3], 1

</llo_original>
